<compile_context>
chip_gen: v7x
topology: tpu7x:2x2x1
jax: 0.10.0
libtpu: 0.0.40
codegen_flags: <defaults>
</compile_context>

<pallas_src>
import functools

import jax
import jax.numpy as jnp
from jax import lax
from jax.experimental import pallas as pl
from jax.experimental.pallas import tpu as pltpu


def _criterion_kernel(ang_p_ref, ang_l_ref, yl_ref, plg_ref, rl_ref,
                      yt_ref, pt_ref, rt_ref, out_ref, acc_ref,
                      *, inv_mse_count, inv_batch):
    pid = pl.program_id(0)

    # ---- MSE over the full (A, N) angle slabs; computed once (block is resident
    #      across the row grid since its block index is constant). ----
    @pl.when(pid == 0)
    def _():
        d = ang_p_ref[...].astype(jnp.float32) - ang_l_ref[...].astype(jnp.float32)
        acc_ref[0, 0] = jnp.sum(d * d) * inv_mse_count

    # One shared iota for all three heads (JAX does not CSE broadcast_in_dim).
    col = lax.broadcasted_iota(jnp.int32, yl_ref.shape, 1)          # (TILE_R, C)

    def ce_partial(logit_ref, tgt_ref):
        # Logits arrive in their native dtype and are upcast here.
        logits = logit_ref[...].astype(jnp.float32)                 # (TILE_R, C)
        tgt = tgt_ref[...]                                          # (TILE_R, 1)
        m = jnp.max(logits, axis=-1, keepdims=True)
        shifted = logits - m
        lse = jnp.log(jnp.sum(jnp.exp(shifted), axis=-1, keepdims=True))
        tgt_logit = jnp.sum(jnp.where(col == tgt, shifted, 0.0),
                            axis=-1, keepdims=True)
        return jnp.sum(lse - tgt_logit)

    ce_sum = (ce_partial(yl_ref, yt_ref)
              + ce_partial(plg_ref, pt_ref)
              + ce_partial(rl_ref, rt_ref))
    # sum(nll)/N over all rows == CE_yaw + CE_pitch + CE_roll (each a mean over N).
    acc_ref[0, 0] += (0.1 * inv_batch) * ce_sum

    @pl.when(pid == pl.num_programs(0) - 1)
    def _():
        out_ref[0, 0] = acc_ref[0, 0]


def _pick_row_tile(n, max_tile=1024):
    """Largest row tile that satisfies the (8, 128) block constraint.

    If n fits in one tile we use the full extent (no divisibility requirement);
    otherwise pick the largest multiple of 8 <= max_tile that divides n,
    falling back to a single full-extent block.
    """
    if n <= max_tile:
        return n
    t = max_tile - (max_tile % 8)
    while t >= 8:
        if n % t == 0:
            return t
        t -= 8
    return n  # fallback: single block (correct, just not pipelined)


def criterion(preds, labels):
    """preds  = (angles_pred (N,A), yaw_logits (N,C), pitch_logits (N,C), roll_logits (N,C))
       labels = (angles_label (N,A), yaw_idx (N,), pitch_idx (N,), roll_idx (N,))"""
    ang_p, y_logit, p_logit, r_logit = preds
    ang_l, y_tgt, p_tgt, r_tgt = labels

    n, a = ang_p.shape
    c = y_logit.shape[-1]

    # Lane-dense angle slabs: (N, A) -> (A, N) so the long axis maps to lanes.
    ang_p_t = ang_p.T
    ang_l_t = ang_l.T

    # Targets as (N, 1) int32 columns (tiny; no logits copy / padding anywhere).
    y_t = y_tgt.reshape(-1, 1).astype(jnp.int32)
    p_t = p_tgt.reshape(-1, 1).astype(jnp.int32)
    r_t = r_tgt.reshape(-1, 1).astype(jnp.int32)

    tile_r = _pick_row_tile(n)
    grid = (n // tile_r,)

    kernel = functools.partial(
        _criterion_kernel,
        inv_mse_count=1.0 / float(n * a),
        inv_batch=1.0 / float(n),
    )

    logit_spec = pl.BlockSpec((tile_r, c), lambda i: (i, 0))
    tgt_spec = pl.BlockSpec((tile_r, 1), lambda i: (i, 0))
    ang_spec = pl.BlockSpec((a, n), lambda i: (0, 0))   # constant block: DMA'd once

    out = pl.pallas_call(
        kernel,
        out_shape=jax.ShapeDtypeStruct((1, 1), jnp.float32),
        grid_spec=pltpu.PrefetchScalarGridSpec(
            num_scalar_prefetch=0,
            grid=grid,
            in_specs=[ang_spec, ang_spec,
                      logit_spec, logit_spec, logit_spec,
                      tgt_spec, tgt_spec, tgt_spec],
            out_specs=pl.BlockSpec(memory_space=pltpu.MemorySpace.SMEM),
            scratch_shapes=[pltpu.SMEM((1, 1), jnp.float32)],
        ),
        compiler_params=pltpu.CompilerParams(
            dimension_semantics=("arbitrary",)),
    )(ang_p_t, ang_l_t, y_logit, p_logit, r_logit, y_t, p_t, r_t)
    return out[0, 0]


def criterion_ref(preds, labels):
    """Pure-JAX reference reproducing the PyTorch semantics."""
    ang_p, y_logit, p_logit, r_logit = preds
    ang_l, y_tgt, p_tgt, r_tgt = labels
    mse = jnp.mean((ang_p - ang_l) ** 2)

    def ce(logits, tgt):
        tgt = tgt.reshape(-1)
        logz = jax.nn.logsumexp(logits.astype(jnp.float32), axis=-1)
        picked = jnp.take_along_axis(logits.astype(jnp.float32),
                                     tgt[:, None], axis=-1)[:, 0]
        return jnp.mean(logz - picked)

    return mse + 0.1 * (ce(y_logit, y_tgt) + ce(p_logit, p_tgt) + ce(r_logit, r_tgt))


if __name__ == "__main__":
    key = jax.random.PRNGKey(0)
    N, A, C = 8, 3, 32  # batch, angle dims, classification bins

    k = jax.random.split(key, 8)
    ang_pred = jax.random.normal(k[0], (N, A), dtype=jnp.float32)
    ang_label = jax.random.normal(k[1], (N, A), dtype=jnp.float32)
    y_logit = jax.random.normal(k[2], (N, C), dtype=jnp.float32)
    p_logit = jax.random.normal(k[3], (N, C), dtype=jnp.float32)
    r_logit = jax.random.normal(k[4], (N, C), dtype=jnp.float32)
    y_tgt = jax.random.randint(k[5], (N,), 0, C, dtype=jnp.int32)
    p_tgt = jax.random.randint(k[6], (N,), 0, C, dtype=jnp.int32)
    r_tgt = jax.random.randint(k[7], (N,), 0, C, dtype=jnp.int32)

    preds = (ang_pred, y_logit, p_logit, r_logit)
    labels = (ang_label, y_tgt, p_tgt, r_tgt)

    loss = jax.block_until_ready(criterion(preds, labels))
    loss_ref = jax.block_until_ready(criterion_ref(preds, labels))

    assert jnp.allclose(loss, loss_ref, rtol=1e-5, atol=1e-5), (loss, loss_ref)
    print("KERNEL_OK")
</pallas_src>

<mosaic_0001>
module attributes {stable_mosaic.version = 11 : i64} {
  func.func @_criterion_kernel(%arg0: i32, %arg1: memref<3x8xf32, #tpu.memory_space<vmem>>, %arg2: memref<3x8xf32, #tpu.memory_space<vmem>>, %arg3: memref<8x32xf32, #tpu.memory_space<vmem>>, %arg4: memref<8x32xf32, #tpu.memory_space<vmem>>, %arg5: memref<8x32xf32, #tpu.memory_space<vmem>>, %arg6: memref<8x1xi32, #tpu.memory_space<vmem>>, %arg7: memref<8x1xi32, #tpu.memory_space<vmem>>, %arg8: memref<8x1xi32, #tpu.memory_space<vmem>>, %arg9: memref<1x1xf32, #tpu.memory_space<smem>>, %arg10: memref<1x1xf32, #tpu.memory_space<smem>>) attributes {dimension_semantics = [#tpu.dimension_semantics<arbitrary>], iteration_bounds = array<i64: 1>, scalar_prefetch = 0 : i64, scratch_operands = 1 : i64, tpu.core_type = #tpu.core_type<tc>, window_params = [{pipeline_mode = #tpu.pipeline_mode<synchronous>, transform_indices = @transform_0, window_bounds = array<i64: 3, 8>}, {pipeline_mode = #tpu.pipeline_mode<synchronous>, transform_indices = @transform_1, window_bounds = array<i64: 3, 8>}, {transform_indices = @transform_2, window_bounds = array<i64: 8, 32>}, {transform_indices = @transform_3, window_bounds = array<i64: 8, 32>}, {transform_indices = @transform_4, window_bounds = array<i64: 8, 32>}, {transform_indices = @transform_5, window_bounds = array<i64: 8, 1>}, {transform_indices = @transform_6, window_bounds = array<i64: 8, 1>}, {transform_indices = @transform_7, window_bounds = array<i64: 8, 1>}, {transform_indices = @transform_8, window_bounds = array<i64: 1, 1>}]} {
    %c0_i32 = arith.constant 0 : i32
    %0 = arith.cmpi eq, %arg0, %c0_i32 : i32
    %1 = arith.extui %0 : i1 to i32
    %c0_i32_0 = arith.constant 0 : i32
    %2 = arith.cmpi ne, %1, %c0_i32_0 : i32
    scf.if %2 {
      %c0_33 = arith.constant 0 : index
      %c0_34 = arith.constant 0 : index
      %76 = vector.load %arg1[%c0_33, %c0_34] : memref<3x8xf32, #tpu.memory_space<vmem>>, vector<3x8xf32>
      %c0_35 = arith.constant 0 : index
      %c0_36 = arith.constant 0 : index
      %77 = vector.load %arg2[%c0_35, %c0_36] : memref<3x8xf32, #tpu.memory_space<vmem>>, vector<3x8xf32>
      %78 = arith.subf %76, %77 : vector<3x8xf32>
      %79 = arith.mulf %78, %78 : vector<3x8xf32>
      %80 = vector.shape_cast %79 : vector<3x8xf32> to vector<1x3x8xf32>
      %cst_37 = arith.constant dense<0.000000e+00> : vector<1xf32>
      %81 = vector.multi_reduction <add>, %80, %cst_37 [1, 2] : vector<1x3x8xf32> to vector<1xf32>
      %82 = vector.shape_cast %81 : vector<1xf32> to vector<1x1x1xf32>
      %83 = vector.extract %82[0, 0, 0] : f32 from vector<1x1x1xf32>
      %cst_38 = arith.constant 0.0416666679 : f32
      %84 = arith.mulf %83, %cst_38 : f32
      %c0_39 = arith.constant 0 : index
      %c0_40 = arith.constant 0 : index
      %85 = memref.load %arg10[%c0_39, %c0_40] : memref<1x1xf32, #tpu.memory_space<smem>>
      memref.store %84, %arg10[%c0_39, %c0_40] : memref<1x1xf32, #tpu.memory_space<smem>>
    } else {
    }
    %3 = tpu.iota {dimensions = array<i32: 1>} : vector<8x32xi32>
    %c0 = arith.constant 0 : index
    %c0_1 = arith.constant 0 : index
    %4 = vector.load %arg3[%c0, %c0_1] : memref<8x32xf32, #tpu.memory_space<vmem>>, vector<8x32xf32>
    %c0_2 = arith.constant 0 : index
    %c0_3 = arith.constant 0 : index
    %5 = vector.load %arg6[%c0_2, %c0_3] : memref<8x1xi32, #tpu.memory_space<vmem>>, vector<8x1xi32>
    %cst = arith.constant dense<0xFF800000> : vector<8xf32>
    %6 = vector.multi_reduction <maximumf>, %4, %cst [1] : vector<8x32xf32> to vector<8xf32>
    %7 = vector.shape_cast %6 : vector<8xf32> to vector<8x1xf32>
    %8 = vector.broadcast %7 : vector<8x1xf32> to vector<8x32xf32>
    %9 = arith.subf %4, %8 : vector<8x32xf32>
    %10 = math.exp %9 : vector<8x32xf32>
    %cst_4 = arith.constant dense<0.000000e+00> : vector<8xf32>
    %11 = vector.multi_reduction <add>, %10, %cst_4 [1] : vector<8x32xf32> to vector<8xf32>
    %12 = vector.shape_cast %11 : vector<8xf32> to vector<8x1xf32>
    %13 = math.log %12 : vector<8x1xf32>
    %14 = vector.broadcast %5 : vector<8x1xi32> to vector<8x32xi32>
    %15 = arith.cmpi eq, %3, %14 : vector<8x32xi32>
    %cst_5 = arith.constant 0.000000e+00 : f32
    %16 = vector.broadcast %cst_5 : f32 to vector<8x32xf32>
    %17 = arith.select %15, %9, %16 : vector<8x32xi1>, vector<8x32xf32>
    %cst_6 = arith.constant dense<0.000000e+00> : vector<8xf32>
    %18 = vector.multi_reduction <add>, %17, %cst_6 [1] : vector<8x32xf32> to vector<8xf32>
    %19 = vector.shape_cast %18 : vector<8xf32> to vector<8x1xf32>
    %20 = arith.subf %13, %19 : vector<8x1xf32>
    %21 = vector.shape_cast %20 : vector<8x1xf32> to vector<1x8x1xf32>
    %cst_7 = arith.constant dense<0.000000e+00> : vector<1xf32>
    %22 = vector.multi_reduction <add>, %21, %cst_7 [1, 2] : vector<1x8x1xf32> to vector<1xf32>
    %23 = vector.shape_cast %22 : vector<1xf32> to vector<1x1x1xf32>
    %24 = vector.extract %23[0, 0, 0] : f32 from vector<1x1x1xf32>
    %c0_8 = arith.constant 0 : index
    %c0_9 = arith.constant 0 : index
    %25 = vector.load %arg4[%c0_8, %c0_9] : memref<8x32xf32, #tpu.memory_space<vmem>>, vector<8x32xf32>
    %c0_10 = arith.constant 0 : index
    %c0_11 = arith.constant 0 : index
    %26 = vector.load %arg7[%c0_10, %c0_11] : memref<8x1xi32, #tpu.memory_space<vmem>>, vector<8x1xi32>
    %cst_12 = arith.constant dense<0xFF800000> : vector<8xf32>
    %27 = vector.multi_reduction <maximumf>, %25, %cst_12 [1] : vector<8x32xf32> to vector<8xf32>
    %28 = vector.shape_cast %27 : vector<8xf32> to vector<8x1xf32>
    %29 = vector.broadcast %28 : vector<8x1xf32> to vector<8x32xf32>
    %30 = arith.subf %25, %29 : vector<8x32xf32>
    %31 = math.exp %30 : vector<8x32xf32>
    %cst_13 = arith.constant dense<0.000000e+00> : vector<8xf32>
    %32 = vector.multi_reduction <add>, %31, %cst_13 [1] : vector<8x32xf32> to vector<8xf32>
    %33 = vector.shape_cast %32 : vector<8xf32> to vector<8x1xf32>
    %34 = math.log %33 : vector<8x1xf32>
    %35 = vector.broadcast %26 : vector<8x1xi32> to vector<8x32xi32>
    %36 = arith.cmpi eq, %3, %35 : vector<8x32xi32>
    %cst_14 = arith.constant 0.000000e+00 : f32
    %37 = vector.broadcast %cst_14 : f32 to vector<8x32xf32>
    %38 = arith.select %36, %30, %37 : vector<8x32xi1>, vector<8x32xf32>
    %cst_15 = arith.constant dense<0.000000e+00> : vector<8xf32>
    %39 = vector.multi_reduction <add>, %38, %cst_15 [1] : vector<8x32xf32> to vector<8xf32>
    %40 = vector.shape_cast %39 : vector<8xf32> to vector<8x1xf32>
    %41 = arith.subf %34, %40 : vector<8x1xf32>
    %42 = vector.shape_cast %41 : vector<8x1xf32> to vector<1x8x1xf32>
    %cst_16 = arith.constant dense<0.000000e+00> : vector<1xf32>
    %43 = vector.multi_reduction <add>, %42, %cst_16 [1, 2] : vector<1x8x1xf32> to vector<1xf32>
    %44 = vector.shape_cast %43 : vector<1xf32> to vector<1x1x1xf32>
    %45 = vector.extract %44[0, 0, 0] : f32 from vector<1x1x1xf32>
    %46 = arith.addf %24, %45 : f32
    %c0_17 = arith.constant 0 : index
    %c0_18 = arith.constant 0 : index
    %47 = vector.load %arg5[%c0_17, %c0_18] : memref<8x32xf32, #tpu.memory_space<vmem>>, vector<8x32xf32>
    %c0_19 = arith.constant 0 : index
    %c0_20 = arith.constant 0 : index
    %48 = vector.load %arg8[%c0_19, %c0_20] : memref<8x1xi32, #tpu.memory_space<vmem>>, vector<8x1xi32>
    %cst_21 = arith.constant dense<0xFF800000> : vector<8xf32>
    %49 = vector.multi_reduction <maximumf>, %47, %cst_21 [1] : vector<8x32xf32> to vector<8xf32>
    %50 = vector.shape_cast %49 : vector<8xf32> to vector<8x1xf32>
    %51 = vector.broadcast %50 : vector<8x1xf32> to vector<8x32xf32>
    %52 = arith.subf %47, %51 : vector<8x32xf32>
    %53 = math.exp %52 : vector<8x32xf32>
    %cst_22 = arith.constant dense<0.000000e+00> : vector<8xf32>
    %54 = vector.multi_reduction <add>, %53, %cst_22 [1] : vector<8x32xf32> to vector<8xf32>
    %55 = vector.shape_cast %54 : vector<8xf32> to vector<8x1xf32>
    %56 = math.log %55 : vector<8x1xf32>
    %57 = vector.broadcast %48 : vector<8x1xi32> to vector<8x32xi32>
    %58 = arith.cmpi eq, %3, %57 : vector<8x32xi32>
    %cst_23 = arith.constant 0.000000e+00 : f32
    %59 = vector.broadcast %cst_23 : f32 to vector<8x32xf32>
    %60 = arith.select %58, %52, %59 : vector<8x32xi1>, vector<8x32xf32>
    %cst_24 = arith.constant dense<0.000000e+00> : vector<8xf32>
    %61 = vector.multi_reduction <add>, %60, %cst_24 [1] : vector<8x32xf32> to vector<8xf32>
    %62 = vector.shape_cast %61 : vector<8xf32> to vector<8x1xf32>
    %63 = arith.subf %56, %62 : vector<8x1xf32>
    %64 = vector.shape_cast %63 : vector<8x1xf32> to vector<1x8x1xf32>
    %cst_25 = arith.constant dense<0.000000e+00> : vector<1xf32>
    %65 = vector.multi_reduction <add>, %64, %cst_25 [1, 2] : vector<1x8x1xf32> to vector<1xf32>
    %66 = vector.shape_cast %65 : vector<1xf32> to vector<1x1x1xf32>
    %67 = vector.extract %66[0, 0, 0] : f32 from vector<1x1x1xf32>
    %68 = arith.addf %46, %67 : f32
    %c0_26 = arith.constant 0 : index
    %c0_27 = arith.constant 0 : index
    %69 = memref.load %arg10[%c0_26, %c0_27] : memref<1x1xf32, #tpu.memory_space<smem>>
    %cst_28 = arith.constant 1.250000e-02 : f32
    %70 = arith.mulf %cst_28, %68 : f32
    %71 = arith.addf %69, %70 : f32
    %c0_29 = arith.constant 0 : index
    %c0_30 = arith.constant 0 : index
    %72 = memref.load %arg10[%c0_29, %c0_30] : memref<1x1xf32, #tpu.memory_space<smem>>
    memref.store %71, %arg10[%c0_29, %c0_30] : memref<1x1xf32, #tpu.memory_space<smem>>
    %c0_i32_31 = arith.constant 0 : i32
    %73 = arith.cmpi eq, %arg0, %c0_i32_31 : i32
    %74 = arith.extui %73 : i1 to i32
    %c0_i32_32 = arith.constant 0 : i32
    %75 = arith.cmpi ne, %74, %c0_i32_32 : i32
    scf.if %75 {
      %c0_33 = arith.constant 0 : index
      %c0_34 = arith.constant 0 : index
      %76 = memref.load %arg10[%c0_33, %c0_34] : memref<1x1xf32, #tpu.memory_space<smem>>
      %c0_35 = arith.constant 0 : index
      %c0_36 = arith.constant 0 : index
      %77 = memref.load %arg9[%c0_35, %c0_36] : memref<1x1xf32, #tpu.memory_space<smem>>
      memref.store %76, %arg9[%c0_35, %c0_36] : memref<1x1xf32, #tpu.memory_space<smem>>
    } else {
    }
    return
  }
  func.func @transform_0(%arg0: i32) -> (i32, i32) {
    %c0_i32 = arith.constant 0 : i32
    %c0_i32_0 = arith.constant 0 : i32
    %c0_i32_1 = arith.constant 0 : i32
    return %c0_i32, %c0_i32_0 : i32, i32
  }
  func.func @transform_1(%arg0: i32) -> (i32, i32) {
    %c0_i32 = arith.constant 0 : i32
    %c0_i32_0 = arith.constant 0 : i32
    %c0_i32_1 = arith.constant 0 : i32
    return %c0_i32, %c0_i32_0 : i32, i32
  }
  func.func @transform_2(%arg0: i32) -> (i32, i32) {
    %c0_i32 = arith.constant 0 : i32
    %c0_i32_0 = arith.constant 0 : i32
    return %arg0, %c0_i32 : i32, i32
  }
  func.func @transform_3(%arg0: i32) -> (i32, i32) {
    %c0_i32 = arith.constant 0 : i32
    %c0_i32_0 = arith.constant 0 : i32
    return %arg0, %c0_i32 : i32, i32
  }
  func.func @transform_4(%arg0: i32) -> (i32, i32) {
    %c0_i32 = arith.constant 0 : i32
    %c0_i32_0 = arith.constant 0 : i32
    return %arg0, %c0_i32 : i32, i32
  }
  func.func @transform_5(%arg0: i32) -> (i32, i32) {
    %c0_i32 = arith.constant 0 : i32
    %c0_i32_0 = arith.constant 0 : i32
    return %arg0, %c0_i32 : i32, i32
  }
  func.func @transform_6(%arg0: i32) -> (i32, i32) {
    %c0_i32 = arith.constant 0 : i32
    %c0_i32_0 = arith.constant 0 : i32
    return %arg0, %c0_i32 : i32, i32
  }
  func.func @transform_7(%arg0: i32) -> (i32, i32) {
    %c0_i32 = arith.constant 0 : i32
    %c0_i32_0 = arith.constant 0 : i32
    return %arg0, %c0_i32 : i32, i32
  }
  func.func @transform_8(%arg0: i32) -> (i32, i32) {
    %c0_i32 = arith.constant 0 : i32
    %c0_i32_0 = arith.constant 0 : i32
    %c0_i32_1 = arith.constant 0 : i32
    return %c0_i32, %c0_i32_0 : i32, i32
  }
}

</mosaic_0001>

<llo_original>
// kernel: tpu_custom_call.1
$region0: #{tpu_custom_call.1}
  #allocation0 [shape = 'u32[]', space=smem, size = 0x4, offset = 0x4, fixed_abs, tag = 'smem constant byte address 0x4 - core index']
  #allocation1 [shape = 'u32[144,128]{1,0:T(1,128)}', space=vmem, size = 0x12000, scoped, tag = 'internal scratch']
  #allocation2 [shape = 'f32[1,1]{1,0:T(1,128)}', space=smem, size = 0x200, scoped, tag = 'scratch operand']
  %s0 = inlined_call_operand.hbm [shape: f32[3,8], index: 0, kind: input, shape index: {}]
  %s1 = inlined_call_operand.vmem [shape: f32[3,8], index: 1, kind: input, shape index: {}]
  %s2 = inlined_call_operand.vmem [shape: f32[8,32], index: 2, kind: input, shape index: {}]
  %s3 = inlined_call_operand.vmem [shape: f32[8,32], index: 3, kind: input, shape index: {}]
  %s4 = inlined_call_operand.vmem [shape: f32[8,32], index: 4, kind: input, shape index: {}]
  %s5 = inlined_call_operand.vmem [shape: s32[8,1], index: 5, kind: input, shape index: {}]
  %s6 = inlined_call_operand.vmem [shape: s32[8,1], index: 6, kind: input, shape index: {}]
  %s7 = inlined_call_operand.vmem [shape: s32[8,1], index: 7, kind: input, shape index: {}]
  %s8 = inlined_call_operand.hbm [shape: f32[1,1], index: 8, kind: output, shape index: {}]
  %s9 = sld [smem:[#allocation0]]
  $region54: #{tpu_custom_call.1} parent=0
    _
  %s11 = ssub.s32 1, %s9
  %s12 = scalar_select 0, %s11, %s9
  $region1: #{tpu_custom_call.1} parent=0
    #allocation3 [shape = 'u8[2048]{0}', space=vmem, size = 0x800, scoped, tag = 'input window, operand 0, single buffered']
    #allocation4 [shape = 's32[1]{0}', space=sflag, size = 0x4, scoped, tag = 'scoped memory for tpu_custom_call.1']
    #allocation5 [shape = 's32[1]{0}', space=sflag, size = 0x4, scoped, tag = 'scoped memory for tpu_custom_call.1']
    #allocation6 [shape = 'u8[512]{0}', space=smem, size = 0x200, scoped, tag = 'output window, operand 0, single buffered']
    %13 = vsyncpa [#allocation4], 0
    %14 = vsyncpa [#allocation5], 0
    // Predicated region
    $region2: #{tpu_custom_call.1} parent=1 // pred_check
      _
    $region3: #{tpu_custom_call.1} parent=1 // pred_check_branch
      %16 = sbr.rel (0) target = $region5
    $region4: #{tpu_custom_call.1} parent=1 // pred_region
      %s18 = ssub.s32 64, 64
      %19 = vsyncadd [#allocation4], %s18
      %s21 = sshll.u32 [#allocation3], 4
      %s22 = int_to_ptr.vmem [resolvable:$true] %s21
      %24 = dma.hbm_to_vmem [thread:$0]  %s0, 64, %s22, [#allocation4]
    $region5: #{tpu_custom_call.1} parent=1 // pred_fallthru
      _
    // Predicated region
    $region6: #{tpu_custom_call.1} parent=1 // pred_check
      _
    $region7: #{tpu_custom_call.1} parent=1 // pred_check_branch
      %26 = sbr.rel (0) target = $region9
    $region8: #{tpu_custom_call.1} parent=1 // pred_region
      _
    $region9: #{tpu_custom_call.1} parent=1 // pred_fallthru
      _
    // Predicated region
    $region10: #{tpu_custom_call.1} parent=1 // pred_check
      _
    $region11: #{tpu_custom_call.1} parent=1 // pred_check_branch
      %28 = sbr.rel (0) target = $region13
    $region12: #{tpu_custom_call.1} parent=1 // pred_region
      _
    $region13: #{tpu_custom_call.1} parent=1 // pred_fallthru
      _
    // Predicated region
    $region14: #{tpu_custom_call.1} parent=1 // pred_check
      _
    $region15: #{tpu_custom_call.1} parent=1 // pred_check_branch
      %30 = sbr.rel (0) target = $region17
    $region16: #{tpu_custom_call.1} parent=1 // pred_region
      _
    $region17: #{tpu_custom_call.1} parent=1 // pred_fallthru
      _
    // Predicated region
    $region18: #{tpu_custom_call.1} parent=1 // pred_check
      _
    $region19: #{tpu_custom_call.1} parent=1 // pred_check_branch
      %32 = sbr.rel (0) target = $region21
    $region20: #{tpu_custom_call.1} parent=1 // pred_region
      _
    $region21: #{tpu_custom_call.1} parent=1 // pred_fallthru
      _
    // Predicated region
    $region22: #{tpu_custom_call.1} parent=1 // pred_check
      _
    $region23: #{tpu_custom_call.1} parent=1 // pred_check_branch
      %34 = sbr.rel (0) target = $region25
    $region24: #{tpu_custom_call.1} parent=1 // pred_region
      _
    $region25: #{tpu_custom_call.1} parent=1 // pred_fallthru
      _
    // Predicated region
    $region26: #{tpu_custom_call.1} parent=1 // pred_check
      _
    $region27: #{tpu_custom_call.1} parent=1 // pred_check_branch
      %36 = sbr.rel (0) target = $region29
    $region28: #{tpu_custom_call.1} parent=1 // pred_region
      _
    $region29: #{tpu_custom_call.1} parent=1 // pred_fallthru
      _
    // Predicated region
    $region30: #{tpu_custom_call.1} parent=1 // pred_check
      _
    $region31: #{tpu_custom_call.1} parent=1 // pred_check_branch
      %38 = sbr.rel (0) target = $region33
    $region32: #{tpu_custom_call.1} parent=1 // pred_region
      _
    $region33: #{tpu_custom_call.1} parent=1 // pred_fallthru
      _
    // Predicated region
    $region34: #{tpu_custom_call.1} parent=1 // pred_check
      _
    $region35: #{tpu_custom_call.1} parent=1 // pred_check_branch
      %40 = sbr.rel (0) target = $region37
    $region36: #{tpu_custom_call.1} parent=1 // pred_region
      %41 = dma.done [#allocation4], 64
    $region37: #{tpu_custom_call.1} parent=1 // pred_fallthru
      _
    %p42 = scmp.eq.s32.totalorder 0, 0
    // Predicated region
    $region38: #{tpu_custom_call.1} parent=1 // pred_check
      %p43 = pneg %p42
    $region39: #{tpu_custom_call.1} parent=1 // pred_check_branch
      %45 = sbr.rel (%p43) target = $region41
    $region40: #{tpu_custom_call.1} parent=1 // pred_region
      %v46 = vld [vmem:[#allocation3] sm:$0x7]
      %v47 = vld [vmem:[%s1] sm:$0x7]
      %v48 = vsub.f32 %v46, %v47
      %v49 = vmul.f32 %v48, %v48
      %vm50 = vcmask 59392
      %v51 = vsel %vm50, %v49, 0.0
      %52 = vadd.xlane.f32.xlu0 %v51
      %v53 = vpop.xlane.xlu0 %52
      %v54 = vrot.slane %v53, 4
      %v55 = vadd.f32 %v53, %v54
      %v56 = vrot.slane %v55, 2
      %v57 = vadd.f32 %v55, %v56
      %v58 = vrot.slane %v57, 1
      %v59 = vadd.f32 %v57, %v58
      %s60 = vtos %v59
      %s61 = smul.f32 %s60, 0.041666668
      %s62 = scalar_lea.smem [#allocation2], 0
      %63 = sst [smem:[%s62]] %s61
    $region41: #{tpu_custom_call.1} parent=1 // pred_fallthru
      _
    %v64 = vlaneseq
    %v65 = vand.u32 %v64, 127
    %v66 = vld [vmem:[%s2] sm:$0xff]
    %v67 = vld [vmem:[%s5] sm:$0xff]
    %vm68 = vcmask 261120
    %v69 = vsel %vm68, %v66, -inf
    %70 = vmax.xlane.f32.xlu0 %v69
    %v71 = vpop.xlane.xlu0 %70
    %v72 = vsub.f32 %v66, %v71
    %v73 = vmul.f32 %v72, 1.442695
    %v74 = vpow.pop %v73
    %v75 = vsel %vm68, %v74, 0.0
    %76 = vadd.xlane.f32.xlu0 %v75
    %v77 = vpop.xlane.xlu0 %76
    %v78 = vlog2.pop %v77
    %v79 = vmul.f32 %v78, 0.6931472
    %80 = vset.pattern.permute.xlu0 0
    %81 = vperm.xlu0 %80, %v67
    %v82 = vpop.permute.xlu0 %81
    %vm83 = vcmp.eq.s32.totalorder %v65, %v82
    %v84 = vsel %vm83, %v72, 0.0
    %v85 = vsel %vm68, %v84, 0.0
    %86 = vadd.xlane.f32.xlu0 %v85
    %v87 = vpop.xlane.xlu0 %86
    %v88 = vsub.f32 %v79, %v87
    %vm89 = vcmask 7168
    %v90 = vsel %vm89, %v88, 0.0
    %91 = vadd.xlane.f32.xlu0 %v90
    %v92 = vpop.xlane.xlu0 %91
    %v93 = vrot.slane %v92, 4
    %v94 = vadd.f32 %v92, %v93
    %v95 = vrot.slane %v94, 2
    %v96 = vadd.f32 %v94, %v95
    %v97 = vrot.slane %v96, 1
    %v98 = vadd.f32 %v96, %v97
    %s99 = vtos %v98
    %v100 = vld [vmem:[%s3] sm:$0xff]
    %v101 = vld [vmem:[%s6] sm:$0xff]
    %v102 = vsel %vm68, %v100, -inf
    %103 = vmax.xlane.f32.xlu0 %v102
    %v104 = vpop.xlane.xlu0 %103
    %v105 = vsub.f32 %v100, %v104
    %v106 = vmul.f32 %v105, 1.442695
    %v107 = vpow.pop %v106
    %v108 = vsel %vm68, %v107, 0.0
    %109 = vadd.xlane.f32.xlu0 %v108
    %v110 = vpop.xlane.xlu0 %109
    %v111 = vlog2.pop %v110
    %v112 = vmul.f32 %v111, 0.6931472
    %113 = vset.pattern.permute.xlu0 0
    %114 = vperm.xlu0 %113, %v101
    %v115 = vpop.permute.xlu0 %114
    %vm116 = vcmp.eq.s32.totalorder %v65, %v115
    %v117 = vsel %vm116, %v105, 0.0
    %v118 = vsel %vm68, %v117, 0.0
    %119 = vadd.xlane.f32.xlu0 %v118
    %v120 = vpop.xlane.xlu0 %119
    %v121 = vsub.f32 %v112, %v120
    %v122 = vsel %vm89, %v121, 0.0
    %123 = vadd.xlane.f32.xlu0 %v122
    %v124 = vpop.xlane.xlu0 %123
    %v125 = vrot.slane %v124, 4
    %v126 = vadd.f32 %v124, %v125
    %v127 = vrot.slane %v126, 2
    %v128 = vadd.f32 %v126, %v127
    %v129 = vrot.slane %v128, 1
    %v130 = vadd.f32 %v128, %v129
    %s131 = vtos %v130
    %s132 = sadd.f32 %s99, %s131
    %v133 = vld [vmem:[%s4] sm:$0xff]
    %v134 = vld [vmem:[%s7] sm:$0xff]
    %v135 = vsel %vm68, %v133, -inf
    %136 = vmax.xlane.f32.xlu0 %v135
    %v137 = vpop.xlane.xlu0 %136
    %v138 = vsub.f32 %v133, %v137
    %v139 = vmul.f32 %v138, 1.442695
    %v140 = vpow.pop %v139
    %v141 = vsel %vm68, %v140, 0.0
    %142 = vadd.xlane.f32.xlu0 %v141
    %v143 = vpop.xlane.xlu0 %142
    %v144 = vlog2.pop %v143
    %v145 = vmul.f32 %v144, 0.6931472
    %146 = vset.pattern.permute.xlu0 0
    %147 = vperm.xlu0 %146, %v134
    %v148 = vpop.permute.xlu0 %147
    %vm149 = vcmp.eq.s32.totalorder %v65, %v148
    %v150 = vsel %vm149, %v138, 0.0
    %v151 = vsel %vm68, %v150, 0.0
    %152 = vadd.xlane.f32.xlu0 %v151
    %v153 = vpop.xlane.xlu0 %152
    %v154 = vsub.f32 %v145, %v153
    %v155 = vsel %vm89, %v154, 0.0
    %156 = vadd.xlane.f32.xlu0 %v155
    %v157 = vpop.xlane.xlu0 %156
    %v158 = vrot.slane %v157, 4
    %v159 = vadd.f32 %v157, %v158
    %v160 = vrot.slane %v159, 2
    %v161 = vadd.f32 %v159, %v160
    %v162 = vrot.slane %v161, 1
    %v163 = vadd.f32 %v161, %v162
    %s164 = vtos %v163
    %s165 = sadd.f32 %s132, %s164
    %s166 = sld [smem:[#allocation2]]
    %s167 = smul.f32 %s165, 0.0125
    %s168 = sadd.f32 %s166, %s167
    %s169 = scalar_lea.smem [#allocation2], 0
    %170 = sst [smem:[%s169]] %s168
    // Predicated region
    $region42: #{tpu_custom_call.1} parent=1 // pred_check
      %p171 = pneg %p42
    $region43: #{tpu_custom_call.1} parent=1 // pred_check_branch
      %173 = sbr.rel (%p171) target = $region45
    $region44: #{tpu_custom_call.1} parent=1 // pred_region
      %s174 = sld [smem:[#allocation2]]
      %s175 = scalar_lea.smem [#allocation6], 0
      %176 = sst [smem:[%s175]] %s174
    $region45: #{tpu_custom_call.1} parent=1 // pred_fallthru
      _
    // Predicated region
    $region46: #{tpu_custom_call.1} parent=1 // pred_check
      _
    $region47: #{tpu_custom_call.1} parent=1 // pred_check_branch
      %178 = sbr.rel (0) target = $region49
    $region48: #{tpu_custom_call.1} parent=1 // pred_region
      %s180 = ssub.s32 16, 16
      %181 = vsyncadd [#allocation5], %s180
      %184 = dma.smem_to_hbm [#allocation6], 16, %s8, [#allocation5]
    $region49: #{tpu_custom_call.1} parent=1 // pred_fallthru
      _
    // Predicated region
    $region50: #{tpu_custom_call.1} parent=1 // pred_check
      _
    $region51: #{tpu_custom_call.1} parent=1 // pred_check_branch
      %186 = sbr.rel (0) target = $region53
    $region52: #{tpu_custom_call.1} parent=1 // pred_region
      %187 = dma.done [#allocation5], 16
    $region53: #{tpu_custom_call.1} parent=1 // pred_fallthru
      _
    %188 = sfence
    %189 = vsyncpa [#allocation4], 1
    %190 = vsyncpa [#allocation5], 1

</llo_original>
